<compile_context>
chip_gen: v5e
topology: v5e:2x2
jax: 0.10.0
libtpu: 0.0.40
codegen_flags: <defaults>
</compile_context>

<pallas_src>
import functools
import math

import jax
import jax.numpy as jnp
from jax.experimental import pallas as pl
from jax.experimental.pallas import tpu as pltpu


# ---------------------------------------------------------------------------
# helpers
# ---------------------------------------------------------------------------
def _round_up(x, m):
    return ((x + m - 1) // m) * m


def _vmem_limit_bytes():
    """Per-generation VMEM cap: ~96 MiB on 128-MiB parts, ~48 MiB on v7x."""
    try:
        cap = pltpu.get_tpu_info().vmem_capacity_bytes
        return int(min(96 * 1024 * 1024, cap * 3 // 4))
    except Exception:
        return 64 * 1024 * 1024


def _pick_seq_tile(s, target):
    """Largest tile <= target that divides s (multiple of 8), else full s."""
    if s <= target:
        return s
    for t in range(target, 127, -8):
        if s % t == 0:
            return t
    return s  # TODO(synk): pad ragged sequence lengths instead of full-S tile


# ---------------------------------------------------------------------------
# Kernel 1: linear  y = x @ W + b   (tiled over M, N, K; f32 accumulator)
# ---------------------------------------------------------------------------
def _linear_kernel(x_ref, w_ref, b_ref, o_ref, acc_ref):
    @pl.when(pl.program_id(2) == 0)
    def _():
        acc_ref[...] = jnp.zeros_like(acc_ref)

    acc_ref[...] += jnp.dot(x_ref[...], w_ref[...],
                            preferred_element_type=jnp.float32)

    @pl.when(pl.program_id(2) == pl.num_programs(2) - 1)
    def _():
        o_ref[...] = (acc_ref[...] + b_ref[...]).astype(o_ref.dtype)


def linear(x2d, w, b, *, out_dtype=jnp.float32,
           block_m=512, block_n=512, block_k=512):
    """y = x2d @ w + b.  x2d:(M,K), w:(K,N) (pre-cast bf16 ok), b:(1,N)."""
    M, K = x2d.shape
    N = w.shape[1]

    def tile(dim, blk):
        if dim <= blk:
            return dim, dim                   # single full-extent block
        return blk, _round_up(dim, blk)       # pad to a multiple of blk

    bm, Mp = tile(M, block_m)
    bn, Np = tile(N, block_n)
    bk, Kp = tile(K, block_k)

    if (Mp, Kp) != (M, K):
        x2d = jnp.pad(x2d, ((0, Mp - M), (0, Kp - K)))
    if (Kp, Np) != (K, N):
        w = jnp.pad(w, ((0, Kp - K), (0, Np - N)))
    if Np != N:
        b = jnp.pad(b, ((0, 0), (0, Np - N)))

    out = pl.pallas_call(
        _linear_kernel,
        out_shape=jax.ShapeDtypeStruct((Mp, Np), out_dtype),
        grid=(Mp // bm, Np // bn, Kp // bk),
        in_specs=[
            pl.BlockSpec((bm, bk), lambda i, j, k: (i, k)),
            pl.BlockSpec((bk, bn), lambda i, j, k: (k, j)),
            pl.BlockSpec((1, bn), lambda i, j, k: (0, j)),
        ],
        out_specs=pl.BlockSpec((bm, bn), lambda i, j, k: (i, j)),
        scratch_shapes=[pltpu.VMEM((bm, bn), jnp.float32)],
        compiler_params=pltpu.CompilerParams(
            dimension_semantics=("parallel", "parallel", "arbitrary"),
            vmem_limit_bytes=_vmem_limit_bytes(),
        ),
    )(x2d, w, b)
    if (Mp, Np) != (M, N):
        out = out[:M, :N]
    return out


# ---------------------------------------------------------------------------
# Kernel 2: flash attention + per-head fc accumulation + residual + LayerNorm
# ---------------------------------------------------------------------------
def _flash_attn_fc_ln_kernel(q_ref, k_ref, v_ref, x_ref, bias_ref,
                             wfc_ref, bfc_ref, g_ref, beta_ref, o_ref,
                             m_ref, l_ref, acc_ref,
                             *, n_head, d_k, d_v, eps):
    kv = pl.program_id(2)

    @pl.when(kv == 0)
    def _():
        m_ref[...] = jnp.full(m_ref.shape, -1e30, m_ref.dtype)
        l_ref[...] = jnp.zeros(l_ref.shape, l_ref.dtype)
        acc_ref[...] = jnp.zeros(acc_ref.shape, acc_ref.dtype)

    q = q_ref[0]                                 # (tq, H*d_k) bf16, pre-scaled
    k = k_ref[0]                                 # (tk, H*d_k) bf16
    v = v_ref[0]                                 # (tk, H*d_v) bf16
    bias = bias_ref[0].astype(jnp.float32)       # (tq, tk) additive mask bias

    # Static unroll over heads.
    # TODO(synk): lift heads to a grid axis (DMA-side slicing) once d_k >= 128.
    for h in range(n_head):
        qh = q[:, h * d_k:(h + 1) * d_k]
        kh = k[:, h * d_k:(h + 1) * d_k]
        vh = v[:, h * d_v:(h + 1) * d_v]
        s = jax.lax.dot_general(qh, kh, (((1,), (1,)), ((), ())),
                                preferred_element_type=jnp.float32) + bias
        m_prev = m_ref[:, h:h + 1]
        m_new = jnp.maximum(m_prev, jnp.max(s, axis=-1, keepdims=True))
        alpha = jnp.exp(m_prev - m_new)
        p = jnp.exp(s - m_new)
        l_ref[:, h:h + 1] = alpha * l_ref[:, h:h + 1] + jnp.sum(
            p, axis=-1, keepdims=True)
        acc_ref[:, h * d_v:(h + 1) * d_v] = (
            alpha * acc_ref[:, h * d_v:(h + 1) * d_v]
            + jnp.dot(p.astype(jnp.bfloat16), vh,
                      preferred_element_type=jnp.float32))
        m_ref[:, h:h + 1] = m_new

    @pl.when(kv == pl.num_programs(2) - 1)
    def _():
        wfc = wfc_ref[...]                        # (H*d_v, D) bf16
        y = x_ref[0] + bfc_ref[...]               # residual + fc bias (f32)
        for h in range(n_head):                   # per-head fc accumulation
            inv = pl.reciprocal(l_ref[:, h:h + 1], approx=True)
            oh = (acc_ref[:, h * d_v:(h + 1) * d_v] * inv).astype(jnp.bfloat16)
            y = y + jnp.dot(oh, wfc[h * d_v:(h + 1) * d_v, :],
                            preferred_element_type=jnp.float32)
        mu = jnp.mean(y, axis=-1, keepdims=True)
        var = jnp.mean(jnp.square(y - mu), axis=-1, keepdims=True)
        o_ref[0] = ((y - mu) * jax.lax.rsqrt(var + eps)
                    * g_ref[...] + beta_ref[...])


def attention_fc_ln(q3, k3, v3, x3, bias3, wfc_bf16, bfc, gamma, beta,
                    *, n_head, d_k, d_v, eps, q_tile=256, kv_tile=512):
    B, Sq, hdk = q3.shape
    Sk = k3.shape[1]
    hdv = v3.shape[2]
    D = x3.shape[2]
    tq = _pick_seq_tile(Sq, q_tile)
    tk = _pick_seq_tile(Sk, kv_tile)
    kernel = functools.partial(_flash_attn_fc_ln_kernel,
                               n_head=n_head, d_k=d_k, d_v=d_v, eps=eps)
    return pl.pallas_call(
        kernel,
        out_shape=jax.ShapeDtypeStruct((B, Sq, D), jnp.float32),
        grid=(B, Sq // tq, Sk // tk),
        in_specs=[
            pl.BlockSpec((1, tq, hdk), lambda b, qi, ki: (b, qi, 0)),
            pl.BlockSpec((1, tk, hdk), lambda b, qi, ki: (b, ki, 0)),
            pl.BlockSpec((1, tk, hdv), lambda b, qi, ki: (b, ki, 0)),
            pl.BlockSpec((1, tq, D), lambda b, qi, ki: (b, qi, 0)),
            pl.BlockSpec((1, tq, tk), lambda b, qi, ki: (b, qi, ki)),
            pl.BlockSpec((hdv, D), lambda b, qi, ki: (0, 0)),
            pl.BlockSpec((1, D), lambda b, qi, ki: (0, 0)),
            pl.BlockSpec((1, D), lambda b, qi, ki: (0, 0)),
            pl.BlockSpec((1, D), lambda b, qi, ki: (0, 0)),
        ],
        out_specs=pl.BlockSpec((1, tq, D), lambda b, qi, ki: (b, qi, 0)),
        scratch_shapes=[
            pltpu.VMEM((tq, n_head), jnp.float32),   # running max, per head
            pltpu.VMEM((tq, n_head), jnp.float32),   # running sum, per head
            pltpu.VMEM((tq, hdv), jnp.float32),      # unnormalized attn out
        ],
        compiler_params=pltpu.CompilerParams(
            dimension_semantics=("parallel", "parallel", "arbitrary"),
            vmem_limit_bytes=_vmem_limit_bytes(),
        ),
    )(q3, k3, v3, x3, bias3, wfc_bf16, bfc, gamma, beta)


# ---------------------------------------------------------------------------
# Module wrapper (plain-JAX glue: weight prep, reshapes, mask -> bias)
# ---------------------------------------------------------------------------
def multi_head_attention_forward(params, x_q, x_k, x_v, mask,
                                 *, n_head, d_k, d_v, eps=1e-5):
    B, Sq, D = x_q.shape
    Sk = x_k.shape[1]
    hdk, hdv = n_head * d_k, n_head * d_v
    scale = jnp.float32(1.0 / math.sqrt(d_k))

    # Fold 1/sqrt(d_k) into W_q/b_q (free) and pre-cast weights to bf16.
    wq = (params["wq"] * scale).astype(jnp.bfloat16)
    bq = params["bq"] * scale
    wk = params["wk"].astype(jnp.bfloat16)
    wv = params["wv"].astype(jnp.bfloat16)
    wfc = params["wfc"].astype(jnp.bfloat16)

    xq_bf = x_q.reshape(B * Sq, D).astype(jnp.bfloat16)

    if (x_k is x_q) and (x_v is x_q):
        # Self-attention: one fused QKV matmul, bf16 intermediate.
        w_qkv = jnp.concatenate([wq, wk, wv], axis=1)
        b_qkv = jnp.concatenate([bq, params["bk"], params["bv"]], axis=1)
        qkv = linear(xq_bf, w_qkv, b_qkv, out_dtype=jnp.bfloat16)
        qkv = qkv.reshape(B, Sq, 2 * hdk + hdv)
        q3 = qkv[:, :, :hdk]
        k3 = qkv[:, :, hdk:2 * hdk]
        v3 = qkv[:, :, 2 * hdk:]
    else:
        q3 = linear(xq_bf, wq, bq,
                    out_dtype=jnp.bfloat16).reshape(B, Sq, hdk)
        if x_k is x_v:
            xk_bf = x_k.reshape(B * Sk, D).astype(jnp.bfloat16)
            w_kv = jnp.concatenate([wk, wv], axis=1)
            b_kv = jnp.concatenate([params["bk"], params["bv"]], axis=1)
            kv = linear(xk_bf, w_kv, b_kv, out_dtype=jnp.bfloat16)
            kv = kv.reshape(B, Sk, hdk + hdv)
            k3, v3 = kv[:, :, :hdk], kv[:, :, hdk:]
        else:
            xk_bf = x_k.reshape(B * Sk, D).astype(jnp.bfloat16)
            xv_bf = x_v.reshape(B * Sk, D).astype(jnp.bfloat16)
            k3 = linear(xk_bf, wk, params["bk"],
                        out_dtype=jnp.bfloat16).reshape(B, Sk, hdk)
            v3 = linear(xv_bf, wv, params["bv"],
                        out_dtype=jnp.bfloat16).reshape(B, Sk, hdv)

    # Additive bf16 mask bias (-1e9 where masked, 0 elsewhere).
    bias3 = jnp.where(mask == 0, jnp.float32(-1e9),
                      jnp.float32(0.0)).astype(jnp.bfloat16)

    return attention_fc_ln(q3, k3, v3, x_q, bias3, wfc, params["bfc"],
                           params["gamma"], params["beta"],
                           n_head=n_head, d_k=d_k, d_v=d_v, eps=eps)


# ---------------------------------------------------------------------------
# Pure-JAX f32 reference (correctness check)
# ---------------------------------------------------------------------------
def reference_forward(params, x_q, x_k, x_v, mask, *, n_head, d_k, d_v):
    B, Sq, D = x_q.shape
    Sk = x_k.shape[1]
    q = (x_q @ params["wq"] + params["bq"]).reshape(
        B, Sq, n_head, d_k).transpose(0, 2, 1, 3)
    k = (x_k @ params["wk"] + params["bk"]).reshape(
        B, Sk, n_head, d_k).transpose(0, 2, 1, 3)
    v = (x_v @ params["wv"] + params["bv"]).reshape(
        B, Sk, n_head, d_v).transpose(0, 2, 1, 3)
    scores = jnp.einsum("bhqd,bhkd->bhqk", q, k) / jnp.sqrt(jnp.float32(d_k))
    scores = jnp.where(mask[:, None, :, :] == 0, -1e9, scores)
    p = jax.nn.softmax(scores, axis=-1)
    a = jnp.einsum("bhqk,bhkd->bhqd", p, v).transpose(
        0, 2, 1, 3).reshape(B, Sq, n_head * d_v)
    y = a @ params["wfc"] + params["bfc"] + x_q
    mu = jnp.mean(y, axis=-1, keepdims=True)
    var = jnp.mean((y - mu) ** 2, axis=-1, keepdims=True)
    return (y - mu) / jnp.sqrt(var + 1e-5) * params["gamma"] + params["beta"]


# ---------------------------------------------------------------------------
if __name__ == "__main__":
    d_model, d_k, d_v, n_head = 32, 8, 8, 4
    B, S = 2, 8

    key = jax.random.PRNGKey(0)
    keys = jax.random.split(key, 12)

    def uinit(k, shape, fan_in):
        bound = 1.0 / (fan_in ** 0.5)
        return jax.random.uniform(k, shape, jnp.float32, -bound, bound)

    params = {
        "wq": uinit(keys[0], (d_model, n_head * d_k), d_model),
        "bq": uinit(keys[1], (1, n_head * d_k), d_model),
        "wk": uinit(keys[2], (d_model, n_head * d_k), d_model),
        "bk": uinit(keys[3], (1, n_head * d_k), d_model),
        "wv": uinit(keys[4], (d_model, n_head * d_v), d_model),
        "bv": uinit(keys[5], (1, n_head * d_v), d_model),
        "wfc": uinit(keys[6], (n_head * d_v, d_model), n_head * d_v),
        "bfc": uinit(keys[7], (1, d_model), n_head * d_v),
        "gamma": jnp.ones((1, d_model), jnp.float32),
        "beta": jnp.zeros((1, d_model), jnp.float32),
    }

    x_q = jax.random.normal(keys[8], (B, S, d_model), jnp.float32)
    causal = jnp.tril(jnp.ones((S, S), jnp.int32))
    mask = jnp.broadcast_to(causal, (B, S, S))

    # --- self-attention (fused QKV) path ---
    out = multi_head_attention_forward(
        params, x_q, x_q, x_q, mask, n_head=n_head, d_k=d_k, d_v=d_v)
    out = jax.block_until_ready(out)
    ref = reference_forward(
        params, x_q, x_q, x_q, mask, n_head=n_head, d_k=d_k, d_v=d_v)
    assert out.shape == (B, S, d_model)
    # bf16 MXU operands / bf16 intermediates with f32 accumulation
    assert jnp.allclose(out, ref, atol=3e-2, rtol=3e-2), "self-attn mismatch"

    # --- cross-attention (split q/k/v) path ---
    x_k2 = jax.random.normal(keys[9], (B, S, d_model), jnp.float32)
    x_v2 = jax.random.normal(keys[10], (B, S, d_model), jnp.float32)
    out2 = multi_head_attention_forward(
        params, x_q, x_k2, x_v2, mask, n_head=n_head, d_k=d_k, d_v=d_v)
    out2 = jax.block_until_ready(out2)
    ref2 = reference_forward(
        params, x_q, x_k2, x_v2, mask, n_head=n_head, d_k=d_k, d_v=d_v)
    assert jnp.allclose(out2, ref2, atol=3e-2, rtol=3e-2), "cross-attn mismatch"

    print("KERNEL_OK")
</pallas_src>

<mosaic_0001>
module attributes {stable_mosaic.version = 11 : i64} {
  func.func @_linear_kernel(%arg0: i32, %arg1: i32, %arg2: i32, %arg3: memref<16x32xbf16, #tpu.memory_space<vmem>>, %arg4: memref<32x96xbf16, #tpu.memory_space<vmem>>, %arg5: memref<1x96xf32, #tpu.memory_space<vmem>>, %arg6: memref<16x96xbf16, #tpu.memory_space<vmem>>, %arg7: memref<16x96xf32, #tpu.memory_space<vmem>>) attributes {dimension_semantics = [#tpu.dimension_semantics<parallel>, #tpu.dimension_semantics<parallel>, #tpu.dimension_semantics<arbitrary>], iteration_bounds = array<i64: 1, 1, 1>, scalar_prefetch = 0 : i64, scratch_operands = 1 : i64, tpu.core_type = #tpu.core_type<tc>, window_params = [{transform_indices = @transform_0, window_bounds = array<i64: 16, 32>}, {transform_indices = @transform_1, window_bounds = array<i64: 32, 96>}, {transform_indices = @transform_2, window_bounds = array<i64: 1, 96>}, {transform_indices = @transform_3, window_bounds = array<i64: 16, 96>}]} {
    %c0_i32 = arith.constant 0 : i32
    %0 = arith.cmpi eq, %arg2, %c0_i32 : i32
    %1 = arith.extui %0 : i1 to i32
    %c0_i32_0 = arith.constant 0 : i32
    %2 = arith.cmpi ne, %1, %c0_i32_0 : i32
    scf.if %2 {
      %cst_10 = arith.constant 0.000000e+00 : f32
      %12 = vector.broadcast %cst_10 : f32 to vector<16x96xf32>
      %c0_11 = arith.constant 0 : index
      %c0_12 = arith.constant 0 : index
      %13 = vector.load %arg7[%c0_11, %c0_12] : memref<16x96xf32, #tpu.memory_space<vmem>>, vector<16x96xf32>
      tpu.vector_store %arg7[%c0_11, %c0_12], %12 {strides = array<i32>} : memref<16x96xf32, #tpu.memory_space<vmem>>, vector<16x96xf32>,
    } else {
    }
    %c0 = arith.constant 0 : index
    %c0_1 = arith.constant 0 : index
    %3 = vector.load %arg7[%c0, %c0_1] : memref<16x96xf32, #tpu.memory_space<vmem>>, vector<16x96xf32>
    %c0_2 = arith.constant 0 : index
    %c0_3 = arith.constant 0 : index
    %4 = vector.load %arg3[%c0_2, %c0_3] : memref<16x32xbf16, #tpu.memory_space<vmem>>, vector<16x32xbf16>
    %c0_4 = arith.constant 0 : index
    %c0_5 = arith.constant 0 : index
    %5 = vector.load %arg4[%c0_4, %c0_5] : memref<32x96xbf16, #tpu.memory_space<vmem>>, vector<32x96xbf16>
    %cst = arith.constant dense<0.000000e+00> : vector<16x96xf32>
    %6 = tpu.matmul %4, %5, %cst {dimension_numbers = #tpu.dot_dimension_numbers<[1], [0], [0], [1], [0, 0, 1, 1], [], []>} : vector<16x32xbf16>, vector<32x96xbf16>, vector<16x96xf32> -> vector<16x96xf32>
    %7 = arith.addf %3, %6 : vector<16x96xf32>
    %c0_6 = arith.constant 0 : index
    %c0_7 = arith.constant 0 : index
    %8 = vector.load %arg7[%c0_6, %c0_7] : memref<16x96xf32, #tpu.memory_space<vmem>>, vector<16x96xf32>
    tpu.vector_store %arg7[%c0_6, %c0_7], %7 {strides = array<i32>} : memref<16x96xf32, #tpu.memory_space<vmem>>, vector<16x96xf32>,
    %c0_i32_8 = arith.constant 0 : i32
    %9 = arith.cmpi eq, %arg2, %c0_i32_8 : i32
    %10 = arith.extui %9 : i1 to i32
    %c0_i32_9 = arith.constant 0 : i32
    %11 = arith.cmpi ne, %10, %c0_i32_9 : i32
    scf.if %11 {
      %c0_10 = arith.constant 0 : index
      %c0_11 = arith.constant 0 : index
      %12 = vector.load %arg7[%c0_10, %c0_11] : memref<16x96xf32, #tpu.memory_space<vmem>>, vector<16x96xf32>
      %c0_12 = arith.constant 0 : index
      %c0_13 = arith.constant 0 : index
      %13 = vector.load %arg5[%c0_12, %c0_13] : memref<1x96xf32, #tpu.memory_space<vmem>>, vector<1x96xf32>
      %14 = vector.broadcast %13 : vector<1x96xf32> to vector<16x96xf32>
      %15 = arith.addf %12, %14 : vector<16x96xf32>
      %16 = arith.truncf %15 : vector<16x96xf32> to vector<16x96xbf16>
      %c0_14 = arith.constant 0 : index
      %c0_15 = arith.constant 0 : index
      %17 = vector.load %arg6[%c0_14, %c0_15] : memref<16x96xbf16, #tpu.memory_space<vmem>>, vector<16x96xbf16>
      tpu.vector_store %arg6[%c0_14, %c0_15], %16 {strides = array<i32>} : memref<16x96xbf16, #tpu.memory_space<vmem>>, vector<16x96xbf16>,
    } else {
    }
    return
  }
  func.func @transform_0(%arg0: i32, %arg1: i32, %arg2: i32) -> (i32, i32) {
    %c0_i32 = arith.constant 0 : i32
    return %arg0, %arg2 : i32, i32
  }
  func.func @transform_1(%arg0: i32, %arg1: i32, %arg2: i32) -> (i32, i32) {
    %c0_i32 = arith.constant 0 : i32
    return %arg2, %arg1 : i32, i32
  }
  func.func @transform_2(%arg0: i32, %arg1: i32, %arg2: i32) -> (i32, i32) {
    %c0_i32 = arith.constant 0 : i32
    %c0_i32_0 = arith.constant 0 : i32
    return %c0_i32, %arg1 : i32, i32
  }
  func.func @transform_3(%arg0: i32, %arg1: i32, %arg2: i32) -> (i32, i32) {
    %c0_i32 = arith.constant 0 : i32
    return %arg0, %arg1 : i32, i32
  }
}

</mosaic_0001>

<llo_original>
// kernel: tpu_custom_call.1
$region0: #{tpu_custom_call.1}
  #allocation0 [shape = 'u32[]', space=smem, size = 0x4, offset = 0x4, fixed_abs, tag = 'smem constant byte address 0x4 - core index']
  #allocation1 [shape = 'u32[72,128]{1,0:T(1,128)}', space=vmem, size = 0x9000, scoped, tag = 'internal scratch']
  #allocation2 [shape = 'f32[16,96]{1,0:T(8,128)}', space=vmem, size = 0x2000, scoped, tag = 'scratch operand']
  %s0 = inlined_call_operand.hbm [shape: bf16[16,32], index: 0, kind: input, shape index: {}]
  %s1 = inlined_call_operand.hbm [shape: bf16[32,96], index: 1, kind: input, shape index: {}]
  %s2 = inlined_call_operand.vmem [shape: f32[1,96], index: 2, kind: input, shape index: {}]
  %s3 = inlined_call_operand.hbm [shape: bf16[16,96], index: 3, kind: output, shape index: {}]
  %s4 = sld [smem:[#allocation0]]
  $region38: #{tpu_custom_call.1} parent=0
    _
  %s6 = ssub.s32 1, %s4
  %s7 = scalar_select 0, %s6, %s4
  $region1: #{tpu_custom_call.1} parent=0
    #allocation3 [shape = 'u8[4096]{0}', space=vmem, size = 0x1000, scoped, tag = 'input window, operand 0, single buffered']
    #allocation4 [shape = 's32[1]{0}', space=sflag, size = 0x4, scoped, tag = 'scoped memory for tpu_custom_call.1']
    #allocation5 [shape = 's32[1]{0}', space=sflag, size = 0x4, scoped, tag = 'scoped memory for tpu_custom_call.1']
    #allocation6 [shape = 'u8[8192]{0}', space=vmem, size = 0x2000, scoped, tag = 'input window, operand 1, single buffered']
    #allocation7 [shape = 's32[1]{0}', space=sflag, size = 0x4, scoped, tag = 'scoped memory for tpu_custom_call.1']
    #allocation8 [shape = 'u8[4096]{0}', space=vmem, size = 0x1000, scoped, tag = 'output window, operand 0, single buffered']
    %8 = vsyncpa [#allocation4], 0
    %9 = vsyncpa [#allocation7], 0
    %10 = vsyncpa [#allocation5], 0
    // Predicated region
    $region2: #{tpu_custom_call.1} parent=1 // pred_check
      _
    $region3: #{tpu_custom_call.1} parent=1 // pred_check_branch
      %12 = sbr.rel (0) target = $region5
    $region4: #{tpu_custom_call.1} parent=1 // pred_region
      %14 = vsyncadd [#allocation4], 0
      %s15 = sshll.u32 %s0, 4
      %s16 = int_to_ptr.hbm [resolvable:$true] %s15
      %s17 = sshll.u32 [#allocation3], 4
      %s18 = int_to_ptr.vmem [resolvable:$true] %s17
      %23 = dma.hbm_to_vmem [thread:$0]  %s16, 128, %s18, [#allocation4], 64, 64, 4
    $region5: #{tpu_custom_call.1} parent=1 // pred_fallthru
      _
    // Predicated region
    $region6: #{tpu_custom_call.1} parent=1 // pred_check
      _
    $region7: #{tpu_custom_call.1} parent=1 // pred_check_branch
      %25 = sbr.rel (0) target = $region9
    $region8: #{tpu_custom_call.1} parent=1 // pred_region
      %27 = vsyncadd [#allocation7], 0
      %s28 = sshll.u32 %s1, 4
      %s29 = int_to_ptr.hbm [resolvable:$true] %s28
      %s30 = sshll.u32 [#allocation6], 4
      %s31 = int_to_ptr.vmem [resolvable:$true] %s30
      %36 = dma.hbm_to_vmem [thread:$0]  %s29, 256, %s31, [#allocation7], 64, 64, 4
    $region9: #{tpu_custom_call.1} parent=1 // pred_fallthru
      _
    // Predicated region
    $region10: #{tpu_custom_call.1} parent=1 // pred_check
      _
    $region11: #{tpu_custom_call.1} parent=1 // pred_check_branch
      %38 = sbr.rel (0) target = $region13
    $region12: #{tpu_custom_call.1} parent=1 // pred_region
      _
    $region13: #{tpu_custom_call.1} parent=1 // pred_fallthru
      _
    // Predicated region
    $region14: #{tpu_custom_call.1} parent=1 // pred_check
      _
    $region15: #{tpu_custom_call.1} parent=1 // pred_check_branch
      %40 = sbr.rel (0) target = $region17
    $region16: #{tpu_custom_call.1} parent=1 // pred_region
      %42 = dma.done [#allocation4], 128
    $region17: #{tpu_custom_call.1} parent=1 // pred_fallthru
      _
    // Predicated region
    $region18: #{tpu_custom_call.1} parent=1 // pred_check
      _
    $region19: #{tpu_custom_call.1} parent=1 // pred_check_branch
      %44 = sbr.rel (0) target = $region21
    $region20: #{tpu_custom_call.1} parent=1 // pred_region
      %46 = dma.done [#allocation7], 256
    $region21: #{tpu_custom_call.1} parent=1 // pred_fallthru
      _
    %p48 = scmp.eq.s32.totalorder 0, 0
    // Predicated region
    $region22: #{tpu_custom_call.1} parent=1 // pred_check
      %p49 = pneg %p48
    $region23: #{tpu_custom_call.1} parent=1 // pred_check_branch
      %51 = sbr.rel (%p49) target = $region25
    $region24: #{tpu_custom_call.1} parent=1 // pred_region
      %vm52 = vcmask 785408
      %53 = vst.msk [vmem:[#allocation2] sm:$0xff] %vm52, 0.0
      %54 = vst.msk [vmem:[#allocation2 + $0x8] sm:$0xff] %vm52, 0.0
    $region25: #{tpu_custom_call.1} parent=1 // pred_fallthru
      _
    %v55 = vld [vmem:[#allocation2] sm:$0xff]
    %v56 = vld [vmem:[#allocation2 + $0x8] sm:$0xff]
    %v57 = vld [vmem:[#allocation3] sm:$0xf]
    %v58 = vld [vmem:[#allocation3 + $0x4] sm:$0xf]
    %v59 = vld [vmem:[#allocation6] sm:$0xf]
    %v60 = vld [vmem:[#allocation6 + $0x4] sm:$0xf]
    %v61 = vld [vmem:[#allocation6 + $0x8] sm:$0xf]
    %v62 = vld [vmem:[#allocation6 + $0xc] sm:$0xf]
    %v65 = vunpack.c.l.b16 %v57
    %v66 = vunpack.c.l.b16 %v58
    %v67 = vpack.c.b16 %v66, %v65
    %v72 = vunpack.c.l.b16 %v59
    %v73 = vunpack.c.l.b16 %v60
    %v74 = vunpack.c.l.b16 %v61
    %v75 = vunpack.c.l.b16 %v62
    %v76 = vpack.c.b16 %v73, %v72
    %v77 = vpack.c.b16 %v75, %v74
    %vm80 = vcmask 261120
    %v82 = vsel %vm80, %v67, 0
    %84 = vmatpush.bf16.msra.mxu0 0
    %85 = vmatpush.bf16.msra.mxu0 0
    %86 = vmatpush.bf16.msra.mxu0 0
    %87 = vmatpush.bf16.msra.mxu0 0
    %88 = vmatpush.bf16.msra.mxu0 0
    %89 = vmatpush.bf16.msra.mxu0 0
    %90 = vmatpush.bf16.msra.mxu0 %v77
    %91 = vmatpush.bf16.msra.mxu0 %v76
    %92 = vmatmul.bf16.gmra.mxu0 %v82
    %v93 = vpop.f32.mrf.mxu0
    %v94 = vadd.f32 0.0, %v93
    %v95 = vpop.f32.mrf.mxu0
    %v96 = vadd.f32 0.0, %v95
    %97 = vdwg.mxu0
    %v98 = vadd.f32 %v55, %v94
    %v99 = vadd.f32 %v56, %v96
    %vm100 = vcmask 785408
    %101 = vst.msk [vmem:[#allocation2] sm:$0xff] %vm100, %v98
    %102 = vst.msk [vmem:[#allocation2 + $0x8] sm:$0xff] %vm100, %v99
    // Predicated region
    $region26: #{tpu_custom_call.1} parent=1 // pred_check
      %p103 = pneg %p48
    $region27: #{tpu_custom_call.1} parent=1 // pred_check_branch
      %105 = sbr.rel (%p103) target = $region29
    $region28: #{tpu_custom_call.1} parent=1 // pred_region
      %v106 = vld [vmem:[#allocation2] sm:$0xff]
      %v107 = vld [vmem:[#allocation2 + $0x8] sm:$0xff]
      %v108 = vld [vmem:[%s2] sm:$0x1]
      %v110 = vperm.slane %v108, 0
      %v112 = vadd.f32 %v106, %v110
      %v113 = vadd.f32 %v107, %v110
      %v114 = vpack.c.bf16 %v112, %v112
      %v115 = vpack.c.bf16 %v113, %v113
      %vm116 = vcmask 781312
      %117 = vst.msk [vmem:[#allocation8] sm:$0xf] %vm116, %v114
      %118 = vst.msk [vmem:[#allocation8 + $0x4] sm:$0xf] %vm116, %v115
    $region29: #{tpu_custom_call.1} parent=1 // pred_fallthru
      _
    // Predicated region
    $region30: #{tpu_custom_call.1} parent=1 // pred_check
      _
    $region31: #{tpu_custom_call.1} parent=1 // pred_check_branch
      %120 = sbr.rel (0) target = $region33
    $region32: #{tpu_custom_call.1} parent=1 // pred_region
      %122 = vsyncadd [#allocation5], 0
      %s123 = sshll.u32 [#allocation8], 4
      %s124 = int_to_ptr.vmem [resolvable:$true] %s123
      %s125 = sshll.u32 %s3, 4
      %s126 = int_to_ptr.hbm [resolvable:$true] %s125
      %131 = dma.vmem_to_hbm [thread:$0]  %s124, 128, %s126, [#allocation5], 64, 64, 4
    $region33: #{tpu_custom_call.1} parent=1 // pred_fallthru
      _
    // Predicated region
    $region34: #{tpu_custom_call.1} parent=1 // pred_check
      _
    $region35: #{tpu_custom_call.1} parent=1 // pred_check_branch
      %133 = sbr.rel (0) target = $region37
    $region36: #{tpu_custom_call.1} parent=1 // pred_region
      %135 = dma.done [#allocation5], 128
    $region37: #{tpu_custom_call.1} parent=1 // pred_fallthru
      _
    %136 = vsyncpa [#allocation4], 1
    %137 = vsyncpa [#allocation7], 1
    %138 = vsyncpa [#allocation5], 1

</llo_original>
